<compile_context>
chip_gen: v6e
topology: v6e:2x2x1
jax: 0.10.0
libtpu: 0.0.40
codegen_flags: <defaults>
</compile_context>

<pallas_src>
import numpy as np
import jax
import jax.numpy as jnp
from jax.experimental import pallas as pl
from jax.experimental.pallas import tpu as pltpu


def _fuse_kernel(x_ref, w_ref, b_ref, det_ref, o_ref):
    # x_ref:   (1, C_in, TS)   nearest-upsampled cls-feature columns (spatial in lanes)
    # w_ref:   (C_out, C_in)   1x1 conv weight (resident in VMEM across grid steps)
    # b_ref:   (C_out, 1)      conv bias       (resident in VMEM across grid steps)
    # det_ref: (1, C_out, TS)  detection-feature columns
    # o_ref:   (1, C_out, TS)
    x = x_ref[0, :, :].astype(jnp.float32)
    att = jnp.dot(w_ref[...].astype(jnp.float32), x,
                  preferred_element_type=jnp.float32)
    # pointwise path kept in f32 (safe on v5e which has no bf16 VPU/EUP)
    att = jax.nn.sigmoid(att + b_ref[...].astype(jnp.float32))
    o_ref[0, :, :] = (att * det_ref[0, :, :].astype(jnp.float32)).astype(o_ref.dtype)


def fuse_level(cls_feat, det_feat, weight, bias, *, tile_s=1024):
    """One pyramid level: interpolate(sigmoid(conv1x1(cls_feat)), det_hw) * det_feat.

    cls_feat: (N, C_in, Hc, Wc)   NCHW
    det_feat: (N, C_out, Hd, Wd)  NCHW
    weight:   (C_out, C_in, 1, 1) Conv2d weight
    bias:     (C_out,)
    returns   (N, C_out, Hd, Wd)
    """
    N, C_in, Hc, Wc = cls_feat.shape
    _, C_out, Hd, Wd = det_feat.shape
    Sc = Hc * Wc
    Sd = Hd * Wd

    # ---- glue: ONE combined nearest-neighbour gather (static indices), no transposes
    h_idx = (np.arange(Hd) * Hc) // Hd      # torch 'nearest' floor semantics
    w_idx = (np.arange(Wd) * Wc) // Wd
    flat_idx = (h_idx[:, None] * Wc + w_idx[None, :]).reshape(-1)        # (Sd,)

    x = cls_feat.reshape(N, C_in, Sc)
    x_up = jnp.take(x, jnp.asarray(flat_idx, dtype=jnp.int32), axis=2)   # (N, C_in, Sd)
    d = det_feat.reshape(N, C_out, Sd)
    w = weight.reshape(C_out, C_in)   # TODO(synk): hoist w/b flattening once per model
    b = bias.reshape(C_out, 1)
    # NOTE: on v6e/v7x casting x_up/d and the output to bfloat16 would halve HBM
    # traffic (keep f32 accumulation); omitted here to preserve exact f32 numerics.

    # ---- tile size: lane-dense (multiple of 128), large enough to amortize the
    # ~0.35us/step grid overhead, capped so double-buffered blocks fit VMEM.
    bytes_per_col = (C_in + 2 * C_out) * 4 * 2       # f32, double-buffered in/det/out
    vmem_budget = 12 * 1024 * 1024
    max_ts = max(128, (vmem_budget // bytes_per_col) // 128 * 128)
    ts = min(tile_s, max_ts)
    if Sd <= ts:
        ts = Sd                                       # whole level = one step per sample
    grid = (N, pl.cdiv(Sd, ts))                       # partial last block handled by Pallas

    out = pl.pallas_call(
        _fuse_kernel,
        out_shape=jax.ShapeDtypeStruct((N, C_out, Sd), det_feat.dtype),
        grid=grid,
        in_specs=[
            pl.BlockSpec((1, C_in, ts), lambda n, s: (n, 0, s)),
            pl.BlockSpec((C_out, C_in), lambda n, s: (0, 0)),   # weight: resident
            pl.BlockSpec((C_out, 1), lambda n, s: (0, 0)),      # bias:   resident
            pl.BlockSpec((1, C_out, ts), lambda n, s: (n, 0, s)),
        ],
        out_specs=pl.BlockSpec((1, C_out, ts), lambda n, s: (n, 0, s)),
        compiler_params=pltpu.CompilerParams(
            dimension_semantics=("parallel", "parallel"),
            vmem_limit_bytes=32 * 1024 * 1024,
        ),
    )(x_up, w, b, d)

    return out.reshape(N, C_out, Hd, Wd)


def fuse_cls_feats_backbone_body(det_feats, cls_feats, att_conv_params):
    """JAX/Pallas equivalent of FuseClsFeatsBackboneBody.forward's fusion.

    det_feats:        OrderedDict-like {key: (N, det_ch, Hd, Wd)}
    cls_feats:        list of (N, cls_ch, Hc, Wc), in cls_feat_name order
    att_conv_params:  list of (weight, bias) for the 1x1 attention convs
    """
    # TODO(synk): det_backbone_body / cls_model are externally injected black-box
    # submodules; their feature maps are taken as kernel inputs here.  The
    # torchvision Resize/Normalize preprocessing of org_image only feeds the
    # black-box cls_model and is therefore not reproduced.
    assert len(det_feats) == len(cls_feats) == len(att_conv_params), \
        "det_feats / cls_feats / att_conv_params length mismatch"
    out = {}
    for (key, det_feat), cls_feat, (w, b) in zip(
            det_feats.items(), cls_feats, att_conv_params):
        out[key] = fuse_level(cls_feat, det_feat, w, b)
    return out


def _reference_fuse_level(cls_feat, det_feat, weight, bias):
    """Pure-JAX reference matching the PyTorch op order (conv -> sigmoid -> nearest -> mul)."""
    N, C_in, Hc, Wc = cls_feat.shape
    _, C_out, Hd, Wd = det_feat.shape
    att = jnp.einsum('oi,nihw->nohw', weight.reshape(C_out, C_in), cls_feat)
    att = att + bias.reshape(1, C_out, 1, 1)
    att = jax.nn.sigmoid(att)
    h_idx = (jnp.arange(Hd) * Hc) // Hd
    w_idx = (jnp.arange(Wd) * Wc) // Wd
    att_up = att[:, :, h_idx, :][:, :, :, w_idx]
    return att_up * det_feat


if __name__ == "__main__":
    key = jax.random.PRNGKey(0)
    N = 2
    # Two pyramid levels (small shapes): det_feat_ch=[16, 32], cls_feat_ch=[8, 16]
    level_cfg = [
        # (key, det_ch, Hd, Wd, cls_ch, Hc, Wc)
        ("0", 16, 16, 16, 8, 8, 8),
        ("1", 32, 8, 8, 16, 4, 4),
    ]

    det_feats = {}
    cls_feats = []
    att_conv_params = []
    for name, det_ch, Hd, Wd, cls_ch, Hc, Wc in level_cfg:
        key, k1, k2, k3, k4 = jax.random.split(key, 5)
        det_feats[name] = jax.random.normal(k1, (N, det_ch, Hd, Wd), jnp.float32)
        cls_feats.append(jax.random.normal(k2, (N, cls_ch, Hc, Wc), jnp.float32))
        # Deterministic Conv2d(cls_ch, det_ch, 1) parameters
        w = jax.random.normal(k3, (det_ch, cls_ch, 1, 1), jnp.float32) * 0.1
        b = jax.random.normal(k4, (det_ch,), jnp.float32) * 0.1
        att_conv_params.append((w, b))

    out = fuse_cls_feats_backbone_body(det_feats, cls_feats, att_conv_params)
    out = jax.tree_util.tree_map(jax.block_until_ready, out)

    # Correctness check against pure-JAX reference
    for (name, det_ch, Hd, Wd, cls_ch, Hc, Wc), cls_feat, (w, b) in zip(
            level_cfg, cls_feats, att_conv_params):
        ref = _reference_fuse_level(cls_feat, det_feats[name], w, b)
        np.testing.assert_allclose(np.asarray(out[name]), np.asarray(ref),
                                   rtol=1e-5, atol=1e-5)
        assert out[name].shape == det_feats[name].shape

    print("KERNEL_OK")
</pallas_src>

<mosaic_0001>
module attributes {stable_mosaic.version = 11 : i64} {
  func.func @_fuse_kernel(%arg0: i32, %arg1: i32, %arg2: memref<1x8x256xf32, #tpu.memory_space<vmem>>, %arg3: memref<16x8xf32, #tpu.memory_space<vmem>>, %arg4: memref<16x1xf32, #tpu.memory_space<vmem>>, %arg5: memref<1x16x256xf32, #tpu.memory_space<vmem>>, %arg6: memref<1x16x256xf32, #tpu.memory_space<vmem>>) attributes {dimension_semantics = [#tpu.dimension_semantics<parallel>, #tpu.dimension_semantics<parallel>], iteration_bounds = array<i64: 2, 1>, scalar_prefetch = 0 : i64, scratch_operands = 0 : i64, tpu.core_type = #tpu.core_type<tc>, window_params = [{transform_indices = @transform_0, window_bounds = array<i64: 1, 8, 256>}, {pipeline_mode = #tpu.pipeline_mode<synchronous>, transform_indices = @transform_1, window_bounds = array<i64: 16, 8>}, {pipeline_mode = #tpu.pipeline_mode<synchronous>, transform_indices = @transform_2, window_bounds = array<i64: 16, 1>}, {transform_indices = @transform_3, window_bounds = array<i64: 1, 16, 256>}, {transform_indices = @transform_4, window_bounds = array<i64: 1, 16, 256>}]} {
    %c0 = arith.constant 0 : index
    %c0_0 = arith.constant 0 : index
    %c0_1 = arith.constant 0 : index
    %0 = vector.load %arg2[%c0, %c0_0, %c0_1] : memref<1x8x256xf32, #tpu.memory_space<vmem>>, vector<1x8x256xf32>
    %1 = vector.shape_cast %0 : vector<1x8x256xf32> to vector<8x256xf32>
    %c0_2 = arith.constant 0 : index
    %c0_3 = arith.constant 0 : index
    %2 = vector.load %arg3[%c0_2, %c0_3] : memref<16x8xf32, #tpu.memory_space<vmem>>, vector<16x8xf32>
    %cst = arith.constant dense<0.000000e+00> : vector<16x256xf32>
    %3 = tpu.matmul %2, %1, %cst {dimension_numbers = #tpu.dot_dimension_numbers<[1], [0], [0], [1], [0, 0, 1, 1], [], []>} : vector<16x8xf32>, vector<8x256xf32>, vector<16x256xf32> -> vector<16x256xf32>
    %c0_4 = arith.constant 0 : index
    %c0_5 = arith.constant 0 : index
    %4 = vector.load %arg4[%c0_4, %c0_5] : memref<16x1xf32, #tpu.memory_space<vmem>>, vector<16x1xf32>
    %5 = vector.broadcast %4 : vector<16x1xf32> to vector<16x256xf32>
    %6 = arith.addf %3, %5 : vector<16x256xf32>
    %7 = arith.negf %6 : vector<16x256xf32>
    %8 = math.exp %7 : vector<16x256xf32>
    %cst_6 = arith.constant 1.000000e+00 : f32
    %9 = vector.broadcast %cst_6 : f32 to vector<16x256xf32>
    %10 = arith.addf %9, %8 : vector<16x256xf32>
    %11 = arith.divf %9, %10 : vector<16x256xf32>
    %c0_7 = arith.constant 0 : index
    %c0_8 = arith.constant 0 : index
    %c0_9 = arith.constant 0 : index
    %12 = vector.load %arg5[%c0_7, %c0_8, %c0_9] : memref<1x16x256xf32, #tpu.memory_space<vmem>>, vector<1x16x256xf32>
    %13 = vector.shape_cast %12 : vector<1x16x256xf32> to vector<16x256xf32>
    %14 = arith.mulf %11, %13 : vector<16x256xf32>
    %c0_10 = arith.constant 0 : index
    %c0_11 = arith.constant 0 : index
    %c0_12 = arith.constant 0 : index
    %15 = vector.load %arg6[%c0_10, %c0_11, %c0_12] : memref<1x16x256xf32, #tpu.memory_space<vmem>>, vector<1x16x256xf32>
    %16 = vector.shape_cast %15 : vector<1x16x256xf32> to vector<16x256xf32>
    %17 = vector.shape_cast %14 : vector<16x256xf32> to vector<1x16x256xf32>
    tpu.vector_store %arg6[%c0_10, %c0_11, %c0_12], %17 {strides = array<i32>} : memref<1x16x256xf32, #tpu.memory_space<vmem>>, vector<1x16x256xf32>,
    return
  }
  func.func @transform_0(%arg0: i32, %arg1: i32) -> (i32, i32, i32) {
    %c0_i32 = arith.constant 0 : i32
    %c0_i32_0 = arith.constant 0 : i32
    return %arg0, %c0_i32, %arg1 : i32, i32, i32
  }
  func.func @transform_1(%arg0: i32, %arg1: i32) -> (i32, i32) {
    %c0_i32 = arith.constant 0 : i32
    %c0_i32_0 = arith.constant 0 : i32
    %c0_i32_1 = arith.constant 0 : i32
    return %c0_i32, %c0_i32_0 : i32, i32
  }
  func.func @transform_2(%arg0: i32, %arg1: i32) -> (i32, i32) {
    %c0_i32 = arith.constant 0 : i32
    %c0_i32_0 = arith.constant 0 : i32
    %c0_i32_1 = arith.constant 0 : i32
    return %c0_i32, %c0_i32_0 : i32, i32
  }
  func.func @transform_3(%arg0: i32, %arg1: i32) -> (i32, i32, i32) {
    %c0_i32 = arith.constant 0 : i32
    %c0_i32_0 = arith.constant 0 : i32
    return %arg0, %c0_i32, %arg1 : i32, i32, i32
  }
  func.func @transform_4(%arg0: i32, %arg1: i32) -> (i32, i32, i32) {
    %c0_i32 = arith.constant 0 : i32
    %c0_i32_0 = arith.constant 0 : i32
    return %arg0, %c0_i32, %arg1 : i32, i32, i32
  }
}

</mosaic_0001>

<llo_original>
// kernel: tpu_custom_call.1
$region0: #{tpu_custom_call.1}
  #allocation0 [shape = 'u32[]', space=smem, size = 0x4, offset = 0x4, fixed_abs, tag = 'smem constant byte address 0x4 - core index']
  #allocation1 [shape = 'u32[144,128]{1,0:T(1,128)}', space=vmem, size = 0x12000, scoped, tag = 'internal scratch']
  %s0 = inlined_call_operand.vmem [shape: f32[2,8,256], index: 0, kind: input, shape index: {}]
  %s1 = inlined_call_operand.vmem [shape: f32[16,8], index: 1, kind: input, shape index: {}]
  %s2 = inlined_call_operand.vmem [shape: f32[16,1], index: 2, kind: input, shape index: {}]
  %s3 = inlined_call_operand.hbm [shape: f32[2,16,256], index: 3, kind: input, shape index: {}]
  %s4 = inlined_call_operand.hbm [shape: f32[2,16,256], index: 4, kind: output, shape index: {}]
  %s5 = sld [smem:[#allocation0]]
  $region53: #{tpu_custom_call.1} parent=0
    _
  %s7 = ssub.s32 1, %s5
  %s8 = scalar_select 0, %s7, %s5
  $region1: #{tpu_custom_call.1} parent=0
    #allocation2 [shape = 'u8[32768]{0}', space=vmem, size = 0x8000, scoped, tag = 'input window, operand 3']
    #allocation3 [shape = 's32[2]{0}', space=sflag, size = 0x8, scoped, tag = 'scoped memory for tpu_custom_call.1']
    #allocation4 [shape = 's32[2]{0}', space=sflag, size = 0x8, scoped, tag = 'scoped memory for tpu_custom_call.1']
    #allocation5 [shape = 'u8[32768]{0}', space=vmem, size = 0x8000, scoped, tag = 'output window, operand 0']
    %9 = vsyncpa [#allocation3], 0
    %s10 = scalar_lea.sflag [#allocation3], 1
    %11 = vsyncpa %s10, 0
    %12 = vsyncpa [#allocation4], 0
    %s13 = scalar_lea.sflag [#allocation4], 1
    %14 = vsyncpa %s13, 0
    loop: start=0, step=1, limit=4
    $region2: #{tpu_custom_call.1} parent=1 // loop_pre_header
      _
    $region3: #{tpu_custom_call.1} parent=1 // loop_header
      %s16 = sphi 0, %s20
      %p17 = scmp.ge.s32.totalorder %s16, 4
      %s23 = sphi 0, %s35
      %s24 = sphi 0, %s31
      %s25 = sphi 0, %s23
      %s26 = sphi 0, %s24
      %s27 = sphi 0, %s25
      %s28 = sphi 0, %s26
      %s40 = sphi 0, %s42
      %s43 = sphi 0, %s40
      %s44 = sphi 0, %s43
      %s60 = sphi 0, %s44
      %s64 = sphi 0, %s64
      %s66 = sphi 0, %s64
      %s67 = sphi 0, %s66
      %s81 = sphi 0, %s67
      %s85 = sphi 0, %s85
      %s87 = sphi 0, %s85
      %s88 = sphi 0, %s87
      %s102 = sphi 0, %s88
      %s110 = sphi 0, %s112
      %s113 = sphi 0, %s110
      %s114 = sphi 0, %s113
      %s130 = sphi 0, %s114
      %s138 = sphi 0, %s140
      %s141 = sphi 0, %s138
      %s142 = sphi 0, %s141
      %s158 = sphi 0, %s142
    $region4: #{tpu_custom_call.1} parent=1 // loop_header_branch
      %19 = sbr.rel (%p17) target = $region8
    $region5: #{tpu_custom_call.1} parent=1 // loop_body
      %s21 = ssub.s32 %s16, 1
      %s22 = ssub.s32 %s16, 2
      %s29 = sadd.s32 1, %s24
      %p30 = scmp.ge.s32.totalorder %s29, 1
      %s31 = scalar_select %p30, 0, %s29
      %s32 = sadd.s32 1, %s23
      %s33 = scalar_select %p30, %s32, %s23
      %p34 = scmp.ge.s32.totalorder %s33, 2
      %s35 = scalar_select %p34, 0, %s33
      %s36 = ssub.s32 %s23, %s35
      %s37 = ssub.s32 %s24, %s31
      %s38 = sor.u32 %s36, %s37
      %p39 = scmp.eq.s32.totalorder %s38, 0
      %s41 = sadd.s32 %s40, 1
      %s42 = scalar_select %p39, %s40, %s41
      %p45 = pneg %p39
      %p46 = scmp.eq.s32.totalorder %s16, 1
      %p47 = por %p45, %p46
      %p48 = scmp.ne.s32.totalorder %s40, %s43
      %p49 = scmp.eq.s32.totalorder %s16, 0
      %p50 = por %p48, %p49
      %p51 = scmp.ne.s32.totalorder %s40, %s43
      %p52 = scmp.eq.s32.totalorder %s21, 1
      %p53 = por %p51, %p52
      %p54 = scmp.ne.s32.totalorder %s43, %s44
      %p55 = scmp.eq.s32.totalorder %s21, 0
      %p56 = por %p54, %p55
      %p57 = scmp.ne.s32.totalorder %s43, %s44
      %p58 = scmp.eq.s32.totalorder %s22, 1
      %p59 = por %p57, %p58
      %p61 = scmp.ne.s32.totalorder %s44, %s60
      %p62 = scmp.eq.s32.totalorder %s22, 0
      %p63 = por %p61, %p62
      %s65 = sadd.s32 %s64, 1
      %p68 = scmp.eq.s32.totalorder %s16, 1
      %p69 = scmp.ne.s32.totalorder %s64, %s66
      %p70 = scmp.eq.s32.totalorder %s16, 0
      %p71 = por %p69, %p70
      %p72 = scmp.ne.s32.totalorder %s64, %s66
      %p73 = scmp.eq.s32.totalorder %s21, 1
      %p74 = por %p72, %p73
      %p75 = scmp.ne.s32.totalorder %s66, %s67
      %p76 = scmp.eq.s32.totalorder %s21, 0
      %p77 = por %p75, %p76
      %p78 = scmp.ne.s32.totalorder %s66, %s67
      %p79 = scmp.eq.s32.totalorder %s22, 1
      %p80 = por %p78, %p79
      %p82 = scmp.ne.s32.totalorder %s67, %s81
      %p83 = scmp.eq.s32.totalorder %s22, 0
      %p84 = por %p82, %p83
      %s86 = sadd.s32 %s85, 1
      %p89 = scmp.eq.s32.totalorder %s16, 1
      %p90 = scmp.ne.s32.totalorder %s85, %s87
      %p91 = scmp.eq.s32.totalorder %s16, 0
      %p92 = por %p90, %p91
      %p93 = scmp.ne.s32.totalorder %s85, %s87
      %p94 = scmp.eq.s32.totalorder %s21, 1
      %p95 = por %p93, %p94
      %p96 = scmp.ne.s32.totalorder %s87, %s88
      %p97 = scmp.eq.s32.totalorder %s21, 0
      %p98 = por %p96, %p97
      %p99 = scmp.ne.s32.totalorder %s87, %s88
      %p100 = scmp.eq.s32.totalorder %s22, 1
      %p101 = por %p99, %p100
      %p103 = scmp.ne.s32.totalorder %s88, %s102
      %p104 = scmp.eq.s32.totalorder %s22, 0
      %p105 = por %p103, %p104
      %s106 = ssub.s32 %s23, %s35
      %s107 = ssub.s32 %s24, %s31
      %s108 = sor.u32 %s106, %s107
      %p109 = scmp.eq.s32.totalorder %s108, 0
      %s111 = sadd.s32 %s110, 1
      %s112 = scalar_select %p109, %s110, %s111
      %p115 = pneg %p109
      %p116 = scmp.eq.s32.totalorder %s16, 1
      %p117 = por %p115, %p116
      %p118 = scmp.ne.s32.totalorder %s110, %s113
      %p119 = scmp.eq.s32.totalorder %s16, 0
      %p120 = por %p118, %p119
      %p121 = scmp.ne.s32.totalorder %s110, %s113
      %p122 = scmp.eq.s32.totalorder %s21, 1
      %p123 = por %p121, %p122
      %p124 = scmp.ne.s32.totalorder %s113, %s114
      %p125 = scmp.eq.s32.totalorder %s21, 0
      %p126 = por %p124, %p125
      %p127 = scmp.ne.s32.totalorder %s113, %s114
      %p128 = scmp.eq.s32.totalorder %s22, 1
      %p129 = por %p127, %p128
      %p131 = scmp.ne.s32.totalorder %s114, %s130
      %p132 = scmp.eq.s32.totalorder %s22, 0
      %p133 = por %p131, %p132
      %s134 = ssub.s32 %s23, %s35
      %s135 = ssub.s32 %s24, %s31
      %s136 = sor.u32 %s134, %s135
      %p137 = scmp.eq.s32.totalorder %s136, 0
      %s139 = sadd.s32 %s138, 1
      %s140 = scalar_select %p137, %s138, %s139
      %p143 = pneg %p137
      %p144 = scmp.eq.s32.totalorder %s16, 1
      %p145 = por %p143, %p144
      %p146 = scmp.ne.s32.totalorder %s138, %s141
      %p147 = scmp.eq.s32.totalorder %s16, 0
      %p148 = por %p146, %p147
      %p149 = scmp.ne.s32.totalorder %s138, %s141
      %p150 = scmp.eq.s32.totalorder %s21, 1
      %p151 = por %p149, %p150
      %p152 = scmp.ne.s32.totalorder %s141, %s142
      %p153 = scmp.eq.s32.totalorder %s21, 0
      %p154 = por %p152, %p153
      %p155 = scmp.ne.s32.totalorder %s141, %s142
      %p156 = scmp.eq.s32.totalorder %s22, 1
      %p157 = por %p155, %p156
      %p159 = scmp.ne.s32.totalorder %s142, %s158
      %p160 = scmp.eq.s32.totalorder %s22, 0
      %p161 = por %p159, %p160
      %p162 = scmp.le.s32.totalorder 1, %s16
      %p163 = scmp.lt.s32.totalorder %s16, 3
      %p164 = pnand %p162, %p163
      %p165 = pneg %p164
      // Predicated region
      $region9: #{tpu_custom_call.1} parent=5 // pred_check
        _
      $region10: #{tpu_custom_call.1} parent=5 // pred_check_branch
        %167 = sbr.rel (%p164) target = $region12
      $region11: #{tpu_custom_call.1} parent=5 // pred_region
        %s168 = ssub.s32 %s16, 1
        // Predicated region
        $region13: #{tpu_custom_call.1} parent=11 // pred_check
          %p169 = pneg %p77
        $region14: #{tpu_custom_call.1} parent=11 // pred_check_branch
          %171 = sbr.rel (%p169) target = $region16
        $region15: #{tpu_custom_call.1} parent=11 // pred_region
          _
        $region16: #{tpu_custom_call.1} parent=11 // pred_fallthru
          _
        // Predicated region
        $region17: #{tpu_custom_call.1} parent=11 // pred_check
          %p172 = pneg %p98
        $region18: #{tpu_custom_call.1} parent=11 // pred_check_branch
          %174 = sbr.rel (%p172) target = $region20
        $region19: #{tpu_custom_call.1} parent=11 // pred_region
          _
        $region20: #{tpu_custom_call.1} parent=11 // pred_fallthru
          _
      $region12: #{tpu_custom_call.1} parent=5 // pred_fallthru
        _
      %p175 = scmp.lt.s32.totalorder %s16, 2
      // Predicated region
      $region21: #{tpu_custom_call.1} parent=5 // pred_check
        %p176 = pneg %p175
      $region22: #{tpu_custom_call.1} parent=5 // pred_check_branch
        %178 = sbr.rel (%p176) target = $region24
      $region23: #{tpu_custom_call.1} parent=5 // pred_region
        // Predicated region
        $region25: #{tpu_custom_call.1} parent=23 // pred_check
          %p179 = pneg %p50
        $region26: #{tpu_custom_call.1} parent=23 // pred_check_branch
          %181 = sbr.rel (%p179) target = $region28
        $region27: #{tpu_custom_call.1} parent=23 // pred_region
          %s182 = smul.u32 2, %s24
          %p183 = scmp.lt.s32.totalorder %s23, 1
          %s184 = scalar_select %p183, %s23, 1
          %p185 = scmp.lt.s32.totalorder %s182, 1
          %s186 = scalar_select %p185, %s182, 1
          %s187 = smul.addr %s184, 2
          %s188 = sadd.s32 %s186, %s187
          %s189 = smul.addr %s188, 8
          %s190 = scalar_lea.vmem %s0, %s189
          %s191 = smul.u32 2, %s24
        $region28: #{tpu_custom_call.1} parent=23 // pred_fallthru
          _
        // Predicated region
        $region29: #{tpu_custom_call.1} parent=23 // pred_check
          %p192 = pneg %p120
        $region30: #{tpu_custom_call.1} parent=23 // pred_check_branch
          %194 = sbr.rel (%p192) target = $region32
        $region31: #{tpu_custom_call.1} parent=23 // pred_region
          %s195 = sand.u32 %s110, 1
          %s196 = scalar_lea.sflag [#allocation3], %s195
          %s197 = sand.u32 %s110, 1
          %s198 = smul.addr %s197, 32
          %s199 = scalar_lea.vmem [#allocation2], %s198
          %s200 = smul.u32 2, %s24
          %s202 = ssub.s32 512, 512
          %203 = vsyncadd %s196, %s202
          %s204 = smul.addr %s23, 4
          %s205 = sadd.s32 %s200, %s204
          %s206 = smul.addr %s205, 128
          %s207 = scalar_lea.hbm %s3, %s206
          %s208 = sshll.u32 %s199, 4
          %s209 = int_to_ptr.vmem [resolvable:$true] %s208
          %214 = dma.hbm_to_vmem [thread:$0]  %s207, 512, %s209, %s196, 256, 256, 16
        $region32: #{tpu_custom_call.1} parent=23 // pred_fallthru
          _
      $region24: #{tpu_custom_call.1} parent=5 // pred_fallthru
        _
      %p215 = scmp.le.s32.totalorder 1, %s16
      %p216 = scmp.lt.s32.totalorder %s16, 3
      %p217 = pnand %p215, %p216
      %p218 = pneg %p217
      // Predicated region
      $region33: #{tpu_custom_call.1} parent=5 // pred_check
        _
      $region34: #{tpu_custom_call.1} parent=5 // pred_check_branch
        %220 = sbr.rel (%p217) target = $region36
      $region35: #{tpu_custom_call.1} parent=5 // pred_region
        %s221 = ssub.s32 %s16, 1
        %s222 = sand.u32 %s113, 1
        %s223 = scalar_lea.sflag [#allocation3], %s222
        %s224 = sand.u32 %s113, 1
        %s225 = smul.addr %s224, 32
        %s226 = scalar_lea.vmem [#allocation2], %s225
        // Predicated region
        $region37: #{tpu_custom_call.1} parent=35 // pred_check
          %p227 = pneg %p126
        $region38: #{tpu_custom_call.1} parent=35 // pred_check_branch
          %229 = sbr.rel (%p227) target = $region40
        $region39: #{tpu_custom_call.1} parent=35 // pred_region
          %230 = dma.done %s223, 512
        $region40: #{tpu_custom_call.1} parent=35 // pred_fallthru
          _
        %s231 = smul.u32 2, %s26
        %p232 = scmp.lt.s32.totalorder %s25, 1
        %s233 = scalar_select %p232, %s25, 1
        %p234 = scmp.lt.s32.totalorder %s231, 1
        %s235 = scalar_select %p234, %s231, 1
        %s236 = smul.addr %s233, 2
        %s237 = sadd.s32 %s235, %s236
        %s238 = smul.addr %s237, 8
        %s239 = scalar_lea.vmem %s0, %s238
        %p240 = pneg %p56
        %p241 = pneg %p53
        %p242 = pneg %p77
        %p243 = pneg %p74
        %p244 = pneg %p98
        %p245 = pneg %p95
        %s246 = sand.u32 %s113, 1
        %s247 = scalar_lea.sflag [#allocation3], %s246
        %s248 = sand.u32 %s113, 1
        %s249 = smul.addr %s248, 32
        %s250 = scalar_lea.vmem [#allocation2], %s249
        %p251 = pneg %p126
        %p252 = pneg %p123
        %p253 = pneg %p154
        %p254 = pneg %p151
        %s255 = sand.u32 %s141, 1
        %s256 = scalar_lea.sflag [#allocation4], %s255
        %s257 = sand.u32 %s141, 1
        %s258 = smul.addr %s257, 32
        %s259 = scalar_lea.vmem [#allocation5], %s258
        %s260 = smul.u32 2, %s26
        %p261 = scmp.lt.s32.totalorder %s25, 1
        %s262 = scalar_select %p261, %s25, 1
        %p263 = scmp.lt.s32.totalorder %s260, 1
        %s264 = scalar_select %p263, %s260, 1
        %s265 = smul.addr %s262, 2
        %s266 = sadd.s32 %s264, %s265
        %s267 = smul.addr %s266, 8
        %s268 = scalar_lea.vmem %s0, %s267
        %s269 = smul.u32 2, %s26
        %s270 = smul.u32 2, %s26
        %s271 = smul.u32 2, %s26
        %v272 = vld [vmem:[%s268] sm:$0xff]
        %v273 = vld [vmem:[%s268 + $0x8] sm:$0xff]
        %v274 = vld [vmem:[%s1] sm:$0xff]
        %v275 = vld [vmem:[%s1 + $0x8] sm:$0xff]
        %v276 = vld [vmem:[%s2] sm:$0xff]
        %v277 = vld [vmem:[%s2 + $0x8] sm:$0xff]
        %279 = vset.pattern.permute.xlu0 0
        %280 = vperm.xlu0 %279, %v276
        %v281 = vpop.permute.xlu0 %280
        %284 = vset.pattern.permute.xlu0 0
        %285 = vperm.xlu0 %284, %v277
        %v286 = vpop.permute.xlu0 %285
        %vm288 = vcmask 64512
        %v290 = vsel %vm288, %v274, 0
        %v293 = vsel %vm288, %v275, 0
        %295 = vmatprep.subr.mxu0 0.0
        %296 = vmatpush1.msra.mxu0 0.0
        %297 = vmatprep.subr.mxu0 0.0
        %298 = vmatpush1.msra.mxu0 0.0
        %299 = vmatprep.subr.mxu0 0.0
        %300 = vmatpush1.msra.mxu0 0.0
        %301 = vmatprep.subr.mxu0 0.0
        %302 = vmatpush1.msra.mxu0 0.0
        %303 = vmatprep.subr.mxu0 0.0
        %304 = vmatpush1.msra.mxu0 0.0
        %305 = vmatprep.subr.mxu0 0.0
        %306 = vmatpush1.msra.mxu0 0.0
        %307 = vmatprep.subr.mxu0 0.0
        %308 = vmatpush1.msra.mxu0 0.0
        %309 = vmatprep.subr.mxu0 0.0
        %310 = vmatpush1.msra.mxu0 0.0
        %311 = vmatprep.subr.mxu0 0.0
        %312 = vmatpush1.msra.mxu0 0.0
        %313 = vmatprep.subr.mxu0 0.0
        %314 = vmatpush1.msra.mxu0 0.0
        %315 = vmatprep.subr.mxu0 0.0
        %316 = vmatpush1.msra.mxu0 0.0
        %317 = vmatprep.subr.mxu0 0.0
        %318 = vmatpush1.msra.mxu0 0.0
        %319 = vmatprep.subr.mxu0 0.0
        %320 = vmatpush1.msra.mxu0 0.0
        %321 = vmatprep.subr.mxu0 0.0
        %322 = vmatpush1.msra.mxu0 0.0
        %323 = vmatprep.subr.mxu0 0.0
        %324 = vmatpush1.msra.mxu0 0.0
        %325 = vmatprep.subr.mxu0 %v273
        %326 = vmatpush1.msra.mxu0 %v272
        %327 = vmatprep.subr.mxu0 0.0
        %328 = vmatpush2.msra.mxu0 0.0
        %329 = vmatprep.subr.mxu0 0.0
        %330 = vmatpush2.msra.mxu0 0.0
        %331 = vmatprep.subr.mxu0 0.0
        %332 = vmatpush2.msra.mxu0 0.0
        %333 = vmatprep.subr.mxu0 0.0
        %334 = vmatpush2.msra.mxu0 0.0
        %335 = vmatprep.subr.mxu0 0.0
        %336 = vmatpush2.msra.mxu0 0.0
        %337 = vmatprep.subr.mxu0 0.0
        %338 = vmatpush2.msra.mxu0 0.0
        %339 = vmatprep.subr.mxu0 0.0
        %340 = vmatpush2.msra.mxu0 0.0
        %341 = vmatprep.subr.mxu0 0.0
        %342 = vmatpush2.msra.mxu0 0.0
        %343 = vmatprep.subr.mxu0 0.0
        %344 = vmatpush2.msra.mxu0 0.0
        %345 = vmatprep.subr.mxu0 0.0
        %346 = vmatpush2.msra.mxu0 0.0
        %347 = vmatprep.subr.mxu0 0.0
        %348 = vmatpush2.msra.mxu0 0.0
        %349 = vmatprep.subr.mxu0 0.0
        %350 = vmatpush2.msra.mxu0 0.0
        %351 = vmatprep.subr.mxu0 0.0
        %352 = vmatpush2.msra.mxu0 0.0
        %353 = vmatprep.subr.mxu0 0.0
        %354 = vmatpush2.msra.mxu0 0.0
        %355 = vmatprep.subr.mxu0 0.0
        %356 = vmatpush2.msra.mxu0 0.0
        %357 = vmatprep.subr.mxu0 0.0
        %358 = vmatpush2.msra.mxu0 0.0
        %359 = vmatprep.mubr.f32.mxu0 0.0
        %360 = vmatmul.mubr.f32.gmra.mxu0 %v290
        %v361 = vpop.f32.mrf.mxu0
        %v362 = vadd.f32 %v281, %v361
        %v363 = vpop.f32.mrf.mxu0
        %v364 = vadd.f32 %v281, %v363
        %365 = vmatprep.mubr.f32.mxu0 0.0
        %366 = vmatmul.mubr.f32.gmra.mxu0 %v293
        %v367 = vpop.f32.mrf.mxu0
        %v368 = vadd.f32 %v286, %v367
        %v369 = vpop.f32.mrf.mxu0
        %v370 = vadd.f32 %v286, %v369
        %371 = vdwg.mxu0
        %v372 = vxor.u32 %v362, 2147483648
        %v373 = vxor.u32 %v364, 2147483648
        %v374 = vxor.u32 %v368, 2147483648
        %v375 = vxor.u32 %v370, 2147483648
        %v376 = vmul.f32 %v372, 1.442695
        %v377 = vpow.pop %v376
        %v378 = vmul.f32 %v373, 1.442695
        %v379 = vpow.pop %v378
        %v380 = vmul.f32 %v374, 1.442695
        %v381 = vpow.pop %v380
        %v382 = vmul.f32 %v375, 1.442695
        %v383 = vpow.pop %v382
        %v384 = vadd.f32 %v377, 1.0
        %v385 = vadd.f32 %v379, 1.0
        %v386 = vadd.f32 %v381, 1.0
        %v387 = vadd.f32 %v383, 1.0
        %v388 = vrcp.pop %v384
        %v389 = vmul.f32 1.0, %v388
        %v390 = vrcp.pop %v385
        %v391 = vmul.f32 1.0, %v390
        %v392 = vrcp.pop %v386
        %v393 = vmul.f32 1.0, %v392
        %v394 = vrcp.pop %v387
        %v395 = vmul.f32 1.0, %v394
        %v396 = vld [vmem:[%s226] sm:$0xff]
        %v397 = vld [vmem:[%s226 + $0x8] sm:$0xff]
        %v398 = vld [vmem:[%s226 + $0x10] sm:$0xff]
        %v399 = vld [vmem:[%s226 + $0x18] sm:$0xff]
        %v400 = vmul.f32 %v389, %v396
        %v401 = vmul.f32 %v391, %v397
        %v402 = vmul.f32 %v393, %v398
        %v403 = vmul.f32 %v395, %v399
        %404 = vst [vmem:[%s259] sm:$0xff] %v400
        %405 = vst [vmem:[%s259 + $0x8] sm:$0xff] %v401
        %406 = vst [vmem:[%s259 + $0x10] sm:$0xff] %v402
        %407 = vst [vmem:[%s259 + $0x18] sm:$0xff] %v403
        %s408 = sand.u32 %s141, 1
        %s409 = scalar_lea.sflag [#allocation4], %s408
        %s410 = sand.u32 %s141, 1
        %s411 = smul.addr %s410, 32
        %s412 = scalar_lea.vmem [#allocation5], %s411
        // Predicated region
        $region41: #{tpu_custom_call.1} parent=35 // pred_check
          %p413 = pneg %p151
        $region42: #{tpu_custom_call.1} parent=35 // pred_check_branch
          %415 = sbr.rel (%p413) target = $region44
        $region43: #{tpu_custom_call.1} parent=35 // pred_region
          %s416 = smul.u32 2, %s26
          %s418 = ssub.s32 512, 512
          %419 = vsyncadd %s409, %s418
          %s420 = smul.addr %s25, 4
          %s421 = sadd.s32 %s416, %s420
          %s422 = smul.addr %s421, 128
          %s423 = scalar_lea.hbm %s4, %s422
          %s424 = sshll.u32 %s412, 4
          %s425 = int_to_ptr.vmem [resolvable:$true] %s424
          %430 = dma.vmem_to_hbm [thread:$0]  %s425, 512, %s423, %s409, 256, 256, 16
        $region44: #{tpu_custom_call.1} parent=35 // pred_fallthru
          _
      $region36: #{tpu_custom_call.1} parent=5 // pred_fallthru
        _
      %p431 = scmp.le.s32.totalorder 2, %s16
      // Predicated region
      $region45: #{tpu_custom_call.1} parent=5 // pred_check
        %p432 = pneg %p431
      $region46: #{tpu_custom_call.1} parent=5 // pred_check_branch
        %434 = sbr.rel (%p432) target = $region48
      $region47: #{tpu_custom_call.1} parent=5 // pred_region
        %s435 = ssub.s32 %s16, 2
        // Predicated region
        $region49: #{tpu_custom_call.1} parent=47 // pred_check
          %p436 = pneg %p157
        $region50: #{tpu_custom_call.1} parent=47 // pred_check_branch
          %438 = sbr.rel (%p436) target = $region52
        $region51: #{tpu_custom_call.1} parent=47 // pred_region
          %s439 = sand.u32 %s142, 1
          %s440 = scalar_lea.sflag [#allocation4], %s439
          %s441 = sand.u32 %s142, 1
          %s442 = smul.addr %s441, 32
          %s443 = scalar_lea.vmem [#allocation5], %s442
          %444 = dma.done %s440, 512
        $region52: #{tpu_custom_call.1} parent=47 // pred_fallthru
          _
      $region48: #{tpu_custom_call.1} parent=5 // pred_fallthru
        _
    $region6: #{tpu_custom_call.1} parent=1 // loop_footer
      %s20 = sadd.s32 1, %s16
    $region7: #{tpu_custom_call.1} parent=1 // loop_footer_branch
      %15 = sbr.rel target = $region3
    $region8: #{tpu_custom_call.1} parent=1 // loop_exit
      _
    %445 = vsyncpa [#allocation3], 1
    %s446 = scalar_lea.sflag [#allocation3], 1
    %447 = vsyncpa %s446, 1
    %448 = vsyncpa [#allocation4], 1
    %s449 = scalar_lea.sflag [#allocation4], 1
    %450 = vsyncpa %s449, 1

</llo_original>
